<compile_context>
chip_gen: v6e
topology: v6e:2x2x1
jax: 0.10.0
libtpu: 0.0.40
codegen_flags: <defaults>
</compile_context>

<pallas_src>
import functools

import jax
import jax.numpy as jnp
from jax.experimental import pallas as pl
from jax.experimental.pallas import tpu as pltpu

EPSILON = 1e-7
_LANE = 128
_SUBLANE = 8
_MIN_TILE = _SUBLANE * _LANE  # 1024 samples = one full f32 vreg per class


def _f1_partials_kernel(pred_ref, label_ref, out_ref, *, num_classes,
                        mask_needed):
    # pred_ref:  (C*8, tile/8) logits; class c occupies rows [8c, 8c+8).
    # label_ref: (8, tile/8) int32 labels (-1 marks padded samples).
    # out_ref:   (8, 128) f32 per-core partial sums, resident across the inner
    #            grid axis.  Columns: [0,C) = tp, [C,2C) = sum(p), [2C,3C) = sum(y).
    i = pl.program_id(1)

    @pl.when(i == 0)
    def _init():
        out_ref[...] = jnp.zeros_like(out_ref)

    C = num_classes
    s = _SUBLANE

    # ---- softmax over the class axis, unrolled over the C row-groups ----
    rows = [pred_ref[c * s:(c + 1) * s, :].astype(jnp.float32)
            for c in range(C)]                                   # each (8, T8)
    m = rows[0]
    for r in rows[1:]:
        m = jnp.maximum(m, r)
    e = [jnp.exp(r - m) for r in rows]
    denom = e[0]
    for x in e[1:]:
        denom = denom + x
    # EUP approx reciprocal + one Newton-Raphson step (~f32-exact, no divide).
    inv = pl.reciprocal(denom, approx=True)
    inv = inv * (jnp.float32(2.0) - denom * inv)                 # (8, T8)

    labels = label_ref[...]                                      # (8, T8) int32
    if mask_needed:
        # Padded columns carry label -1: zero their probability contribution
        # once, through the shared reciprocal (one-hot already excludes -1).
        inv = inv * (labels >= 0).astype(jnp.float32)

    # ---- per-class partial sums: tp, sum(p), sum(y) ----
    for c in range(C):
        p_c = e[c] * inv                                         # softmax prob
        y_c = (labels == c).astype(jnp.float32)                  # one-hot
        t = y_c * p_c
        out_ref[:, c:c + 1] += jnp.sum(t, axis=1, keepdims=True)
        out_ref[:, C + c:C + c + 1] += jnp.sum(p_c, axis=1, keepdims=True)
        out_ref[:, 2 * C + c:2 * C + c + 1] += jnp.sum(y_c, axis=1,
                                                       keepdims=True)
        # fp = sum(p) - tp, fn = sum(y) - tp are recovered in the wrapper;
        # tn is computed by the PyTorch module but never used in the loss.


def f1_loss(y_pred: jax.Array, y_true: jax.Array, classes: int = 3,
            epsilon: float = EPSILON, tile_n: int = 512 * 1024,
            core_split: int = 2) -> jax.Array:
    """Pallas implementation of F1Loss.forward.

    y_pred: (N, C) float logits (f32 or bf16)
    y_true: (N,)   integer class labels in [0, classes)
    returns: scalar float32 loss
    """
    assert y_pred.ndim == 2
    assert y_true.ndim == 1
    n, c = y_pred.shape
    assert c == classes
    assert y_true.shape[0] == n

    # Tile size in samples: multiple of 1024 (8 sublanes x 128 lanes), clamped
    # to the padded batch.
    tile_n = max(_MIN_TILE,
                 (min(tile_n, pl.cdiv(n, _MIN_TILE) * _MIN_TILE)
                  // _MIN_TILE) * _MIN_TILE)
    total_tiles = pl.cdiv(n, tile_n)
    n_outer = core_split if total_tiles >= core_split else 1   # v7x: 2 TCs
    inner = pl.cdiv(total_tiles, n_outer)
    n_pad = n_outer * inner * tile_n
    mask_needed = (n_pad != n)
    tile8 = tile_n // _SUBLANE
    n8 = n_pad // _SUBLANE

    y_pred_p = y_pred
    y_true_p = y_true.astype(jnp.int32)
    if mask_needed:
        y_pred_p = jnp.pad(y_pred_p, ((0, n_pad - n), (0, 0)))       # logits 0
        y_true_p = jnp.pad(y_true_p, ((0, n_pad - n),),
                           constant_values=-1)                        # label -1

    # Sublane-packed layouts (ideally fused into the pallas input by XLA via
    # allow_input_fusion; otherwise a single extra pass over the small copy):
    #   pred_packed[c*8 + i // n8, i % n8] = y_pred[i, c]
    #   labels_packed[i // n8, i % n8]     = y_true[i]
    pred_packed = jnp.transpose(y_pred_p).reshape(classes * _SUBLANE, n8)
    labels_packed = y_true_p.reshape(_SUBLANE, n8)

    kernel = functools.partial(_f1_partials_kernel, num_classes=classes,
                               mask_needed=mask_needed)

    partials = pl.pallas_call(
        kernel,
        out_shape=jax.ShapeDtypeStruct((n_outer * _SUBLANE, _LANE),
                                       jnp.float32),
        grid=(n_outer, inner),
        in_specs=[
            pl.BlockSpec((classes * _SUBLANE, tile8),
                         lambda o, i: (0, o * inner + i)),
            pl.BlockSpec((_SUBLANE, tile8),
                         lambda o, i: (0, o * inner + i)),
        ],
        out_specs=pl.BlockSpec((_SUBLANE, _LANE), lambda o, i: (o, 0)),
        compiler_params=pltpu.CompilerParams(
            dimension_semantics=("parallel", "arbitrary"),
            vmem_limit_bytes=48 * 1024 * 1024,
            allow_input_fusion=[True, True],
        ),
    )(pred_packed, labels_packed)

    # ---- tiny finalize in plain JAX (per-core / per-sublane partials -> F1) ----
    sums = jnp.sum(partials, axis=0)                      # (128,)
    tp = sums[0:classes]
    sp = sums[classes:2 * classes]                        # sum of probabilities
    sy = sums[2 * classes:3 * classes]                    # true counts
    fp = sp - tp
    fn = sy - tp
    eps = jnp.float32(epsilon)
    precision = tp / (tp + fp + eps)
    recall = tp / (tp + fn + eps)
    f1 = 2.0 * precision * recall / (precision + recall + eps)
    f1 = jnp.clip(f1, eps, 1.0 - eps)
    return (1.0 - jnp.mean(f1)).astype(jnp.float32)


def _f1_loss_ref(y_pred, y_true, classes=3, epsilon=EPSILON):
    # pure-JAX reference matching the PyTorch module
    y_true_oh = jax.nn.one_hot(y_true, classes, dtype=jnp.float32)
    p = jax.nn.softmax(y_pred.astype(jnp.float32), axis=1)
    tp = jnp.sum(y_true_oh * p, axis=0)
    fp = jnp.sum((1 - y_true_oh) * p, axis=0)
    fn = jnp.sum(y_true_oh * (1 - p), axis=0)
    precision = tp / (tp + fp + epsilon)
    recall = tp / (tp + fn + epsilon)
    f1 = 2 * precision * recall / (precision + recall + epsilon)
    f1 = jnp.clip(f1, epsilon, 1 - epsilon)
    return 1 - jnp.mean(f1)


if __name__ == "__main__":
    classes = 3
    key = jax.random.PRNGKey(0)
    k1, k2, k3, k4, k5, k6 = jax.random.split(key, 6)

    # (a) tiny batch: single masked tile, grid (1, 1).
    y_pred = jax.random.normal(k1, (8, classes), dtype=jnp.float32)
    y_true = jax.random.randint(k2, (8,), 0, classes, dtype=jnp.int32)
    loss = f1_loss(y_pred, y_true, classes=classes)
    jax.block_until_ready(loss)
    ref = _f1_loss_ref(y_pred, y_true, classes=classes)
    assert jnp.allclose(loss, ref, atol=1e-4, rtol=1e-4), (loss, ref)

    # (b) tile-aligned batch, 2-way outer ("parallel") split, no masking.
    y_pred2 = jax.random.normal(k3, (2048, classes), dtype=jnp.float32)
    y_true2 = jax.random.randint(k4, (2048,), 0, classes, dtype=jnp.int32)
    loss2 = f1_loss(y_pred2, y_true2, classes=classes, tile_n=1024)
    jax.block_until_ready(loss2)
    ref2 = _f1_loss_ref(y_pred2, y_true2, classes=classes)
    assert jnp.allclose(loss2, ref2, atol=1e-4, rtol=1e-4), (loss2, ref2)

    # (c) multi-tile with masked remainder: grid (2, 2), last tile partial.
    y_pred3 = jax.random.normal(k5, (3000, classes), dtype=jnp.float32)
    y_true3 = jax.random.randint(k6, (3000,), 0, classes, dtype=jnp.int32)
    loss3 = f1_loss(y_pred3, y_true3, classes=classes, tile_n=1024)
    jax.block_until_ready(loss3)
    ref3 = _f1_loss_ref(y_pred3, y_true3, classes=classes)
    assert jnp.allclose(loss3, ref3, atol=1e-4, rtol=1e-4), (loss3, ref3)

    print("KERNEL_OK")
</pallas_src>

<mosaic_0001>
module attributes {stable_mosaic.version = 11 : i64} {
  func.func @_f1_partials_kernel(%arg0: i32, %arg1: i32, %arg2: memref<24x128xf32, #tpu.memory_space<vmem>>, %arg3: memref<8x128xi32, #tpu.memory_space<vmem>>, %arg4: memref<8x128xf32, #tpu.memory_space<vmem>>) attributes {dimension_semantics = [#tpu.dimension_semantics<parallel>, #tpu.dimension_semantics<arbitrary>], iteration_bounds = array<i64: 1, 1>, scalar_prefetch = 0 : i64, scratch_operands = 0 : i64, tpu.core_type = #tpu.core_type<tc>, window_params = [{transform_indices = @transform_0, window_bounds = array<i64: 24, 128>}, {transform_indices = @transform_1, window_bounds = array<i64: 8, 128>}, {transform_indices = @transform_2, window_bounds = array<i64: 8, 128>}]} {
    %c0_i32 = arith.constant 0 : i32
    %0 = arith.cmpi eq, %arg1, %c0_i32 : i32
    %1 = arith.extui %0 : i1 to i32
    %c0_i32_0 = arith.constant 0 : i32
    %2 = arith.cmpi ne, %1, %c0_i32_0 : i32
    scf.if %2 {
      %cst_46 = arith.constant 0.000000e+00 : f32
      %90 = vector.broadcast %cst_46 : f32 to vector<8x128xf32>
      %c0_47 = arith.constant 0 : index
      %c0_48 = arith.constant 0 : index
      %91 = vector.load %arg4[%c0_47, %c0_48] : memref<8x128xf32, #tpu.memory_space<vmem>>, vector<8x128xf32>
      tpu.vector_store %arg4[%c0_47, %c0_48], %90 {strides = array<i32>} : memref<8x128xf32, #tpu.memory_space<vmem>>, vector<8x128xf32>,
    } else {
    }
    %c0 = arith.constant 0 : index
    %c0_1 = arith.constant 0 : index
    %3 = vector.load %arg2[%c0, %c0_1] : memref<24x128xf32, #tpu.memory_space<vmem>>, vector<8x128xf32>
    %c8 = arith.constant 8 : index
    %c0_2 = arith.constant 0 : index
    %4 = vector.load %arg2[%c8, %c0_2] : memref<24x128xf32, #tpu.memory_space<vmem>>, vector<8x128xf32>
    %c16 = arith.constant 16 : index
    %c0_3 = arith.constant 0 : index
    %5 = vector.load %arg2[%c16, %c0_3] : memref<24x128xf32, #tpu.memory_space<vmem>>, vector<8x128xf32>
    %6 = arith.maximumf %3, %4 : vector<8x128xf32>
    %7 = arith.maximumf %6, %5 : vector<8x128xf32>
    %8 = arith.subf %3, %7 : vector<8x128xf32>
    %9 = math.exp %8 : vector<8x128xf32>
    %10 = arith.subf %4, %7 : vector<8x128xf32>
    %11 = math.exp %10 : vector<8x128xf32>
    %12 = arith.subf %5, %7 : vector<8x128xf32>
    %13 = math.exp %12 : vector<8x128xf32>
    %14 = arith.addf %9, %11 : vector<8x128xf32>
    %15 = arith.addf %14, %13 : vector<8x128xf32>
    %16 = tpu.reciprocal %15 {approx = true} : vector<8x128xf32> -> vector<8x128xf32>
    %17 = arith.mulf %15, %16 : vector<8x128xf32>
    %cst = arith.constant 2.000000e+00 : f32
    %18 = vector.broadcast %cst : f32 to vector<8x128xf32>
    %19 = arith.subf %18, %17 : vector<8x128xf32>
    %20 = arith.mulf %16, %19 : vector<8x128xf32>
    %c0_4 = arith.constant 0 : index
    %c0_5 = arith.constant 0 : index
    %21 = vector.load %arg3[%c0_4, %c0_5] : memref<8x128xi32, #tpu.memory_space<vmem>>, vector<8x128xi32>
    %c0_i32_6 = arith.constant 0 : i32
    %22 = vector.broadcast %c0_i32_6 : i32 to vector<8x128xi32>
    %23 = arith.cmpi sge, %21, %22 : vector<8x128xi32>
    %24 = arith.extui %23 : vector<8x128xi1> to vector<8x128xi32>
    %25 = arith.sitofp %24 : vector<8x128xi32> to vector<8x128xf32>
    %26 = arith.mulf %20, %25 : vector<8x128xf32>
    %27 = arith.mulf %9, %26 : vector<8x128xf32>
    %c0_i32_7 = arith.constant 0 : i32
    %28 = vector.broadcast %c0_i32_7 : i32 to vector<8x128xi32>
    %29 = arith.cmpi eq, %21, %28 : vector<8x128xi32>
    %30 = arith.extui %29 : vector<8x128xi1> to vector<8x128xi32>
    %31 = arith.sitofp %30 : vector<8x128xi32> to vector<8x128xf32>
    %32 = arith.mulf %31, %27 : vector<8x128xf32>
    %c0_8 = arith.constant 0 : index
    %c0_9 = arith.constant 0 : index
    %33 = vector.load %arg4[%c0_8, %c0_9] : memref<8x128xf32, #tpu.memory_space<vmem>>, vector<8x1xf32>
    %cst_10 = arith.constant dense<0.000000e+00> : vector<8xf32>
    %34 = vector.multi_reduction <add>, %32, %cst_10 [1] : vector<8x128xf32> to vector<8xf32>
    %35 = vector.shape_cast %34 : vector<8xf32> to vector<8x1xf32>
    %36 = arith.addf %33, %35 : vector<8x1xf32>
    %c0_11 = arith.constant 0 : index
    %c0_12 = arith.constant 0 : index
    %37 = vector.load %arg4[%c0_11, %c0_12] : memref<8x128xf32, #tpu.memory_space<vmem>>, vector<8x1xf32>
    tpu.vector_store %arg4[%c0_11, %c0_12], %36 {strides = array<i32>} : memref<8x128xf32, #tpu.memory_space<vmem>>, vector<8x1xf32>,
    %c0_13 = arith.constant 0 : index
    %c3 = arith.constant 3 : index
    %38 = vector.load %arg4[%c0_13, %c3] : memref<8x128xf32, #tpu.memory_space<vmem>>, vector<8x1xf32>
    %cst_14 = arith.constant dense<0.000000e+00> : vector<8xf32>
    %39 = vector.multi_reduction <add>, %27, %cst_14 [1] : vector<8x128xf32> to vector<8xf32>
    %40 = vector.shape_cast %39 : vector<8xf32> to vector<8x1xf32>
    %41 = arith.addf %38, %40 : vector<8x1xf32>
    %c0_15 = arith.constant 0 : index
    %c3_16 = arith.constant 3 : index
    %42 = vector.load %arg4[%c0_15, %c3_16] : memref<8x128xf32, #tpu.memory_space<vmem>>, vector<8x1xf32>
    tpu.vector_store %arg4[%c0_15, %c3_16], %41 {strides = array<i32>} : memref<8x128xf32, #tpu.memory_space<vmem>>, vector<8x1xf32>,
    %c0_17 = arith.constant 0 : index
    %c6 = arith.constant 6 : index
    %43 = vector.load %arg4[%c0_17, %c6] : memref<8x128xf32, #tpu.memory_space<vmem>>, vector<8x1xf32>
    %cst_18 = arith.constant dense<0.000000e+00> : vector<8xf32>
    %44 = vector.multi_reduction <add>, %31, %cst_18 [1] : vector<8x128xf32> to vector<8xf32>
    %45 = vector.shape_cast %44 : vector<8xf32> to vector<8x1xf32>
    %46 = arith.addf %43, %45 : vector<8x1xf32>
    %c0_19 = arith.constant 0 : index
    %c6_20 = arith.constant 6 : index
    %47 = vector.load %arg4[%c0_19, %c6_20] : memref<8x128xf32, #tpu.memory_space<vmem>>, vector<8x1xf32>
    tpu.vector_store %arg4[%c0_19, %c6_20], %46 {strides = array<i32>} : memref<8x128xf32, #tpu.memory_space<vmem>>, vector<8x1xf32>,
    %48 = arith.mulf %11, %26 : vector<8x128xf32>
    %c1_i32 = arith.constant 1 : i32
    %49 = vector.broadcast %c1_i32 : i32 to vector<8x128xi32>
    %50 = arith.cmpi eq, %21, %49 : vector<8x128xi32>
    %51 = arith.extui %50 : vector<8x128xi1> to vector<8x128xi32>
    %52 = arith.sitofp %51 : vector<8x128xi32> to vector<8x128xf32>
    %53 = arith.mulf %52, %48 : vector<8x128xf32>
    %c0_21 = arith.constant 0 : index
    %c1 = arith.constant 1 : index
    %54 = vector.load %arg4[%c0_21, %c1] : memref<8x128xf32, #tpu.memory_space<vmem>>, vector<8x1xf32>
    %cst_22 = arith.constant dense<0.000000e+00> : vector<8xf32>
    %55 = vector.multi_reduction <add>, %53, %cst_22 [1] : vector<8x128xf32> to vector<8xf32>
    %56 = vector.shape_cast %55 : vector<8xf32> to vector<8x1xf32>
    %57 = arith.addf %54, %56 : vector<8x1xf32>
    %c0_23 = arith.constant 0 : index
    %c1_24 = arith.constant 1 : index
    %58 = vector.load %arg4[%c0_23, %c1_24] : memref<8x128xf32, #tpu.memory_space<vmem>>, vector<8x1xf32>
    tpu.vector_store %arg4[%c0_23, %c1_24], %57 {strides = array<i32>} : memref<8x128xf32, #tpu.memory_space<vmem>>, vector<8x1xf32>,
    %c0_25 = arith.constant 0 : index
    %c4 = arith.constant 4 : index
    %59 = vector.load %arg4[%c0_25, %c4] : memref<8x128xf32, #tpu.memory_space<vmem>>, vector<8x1xf32>
    %cst_26 = arith.constant dense<0.000000e+00> : vector<8xf32>
    %60 = vector.multi_reduction <add>, %48, %cst_26 [1] : vector<8x128xf32> to vector<8xf32>
    %61 = vector.shape_cast %60 : vector<8xf32> to vector<8x1xf32>
    %62 = arith.addf %59, %61 : vector<8x1xf32>
    %c0_27 = arith.constant 0 : index
    %c4_28 = arith.constant 4 : index
    %63 = vector.load %arg4[%c0_27, %c4_28] : memref<8x128xf32, #tpu.memory_space<vmem>>, vector<8x1xf32>
    tpu.vector_store %arg4[%c0_27, %c4_28], %62 {strides = array<i32>} : memref<8x128xf32, #tpu.memory_space<vmem>>, vector<8x1xf32>,
    %c0_29 = arith.constant 0 : index
    %c7 = arith.constant 7 : index
    %64 = vector.load %arg4[%c0_29, %c7] : memref<8x128xf32, #tpu.memory_space<vmem>>, vector<8x1xf32>
    %cst_30 = arith.constant dense<0.000000e+00> : vector<8xf32>
    %65 = vector.multi_reduction <add>, %52, %cst_30 [1] : vector<8x128xf32> to vector<8xf32>
    %66 = vector.shape_cast %65 : vector<8xf32> to vector<8x1xf32>
    %67 = arith.addf %64, %66 : vector<8x1xf32>
    %c0_31 = arith.constant 0 : index
    %c7_32 = arith.constant 7 : index
    %68 = vector.load %arg4[%c0_31, %c7_32] : memref<8x128xf32, #tpu.memory_space<vmem>>, vector<8x1xf32>
    tpu.vector_store %arg4[%c0_31, %c7_32], %67 {strides = array<i32>} : memref<8x128xf32, #tpu.memory_space<vmem>>, vector<8x1xf32>,
    %69 = arith.mulf %13, %26 : vector<8x128xf32>
    %c2_i32 = arith.constant 2 : i32
    %70 = vector.broadcast %c2_i32 : i32 to vector<8x128xi32>
    %71 = arith.cmpi eq, %21, %70 : vector<8x128xi32>
    %72 = arith.extui %71 : vector<8x128xi1> to vector<8x128xi32>
    %73 = arith.sitofp %72 : vector<8x128xi32> to vector<8x128xf32>
    %74 = arith.mulf %73, %69 : vector<8x128xf32>
    %c0_33 = arith.constant 0 : index
    %c2 = arith.constant 2 : index
    %75 = vector.load %arg4[%c0_33, %c2] : memref<8x128xf32, #tpu.memory_space<vmem>>, vector<8x1xf32>
    %cst_34 = arith.constant dense<0.000000e+00> : vector<8xf32>
    %76 = vector.multi_reduction <add>, %74, %cst_34 [1] : vector<8x128xf32> to vector<8xf32>
    %77 = vector.shape_cast %76 : vector<8xf32> to vector<8x1xf32>
    %78 = arith.addf %75, %77 : vector<8x1xf32>
    %c0_35 = arith.constant 0 : index
    %c2_36 = arith.constant 2 : index
    %79 = vector.load %arg4[%c0_35, %c2_36] : memref<8x128xf32, #tpu.memory_space<vmem>>, vector<8x1xf32>
    tpu.vector_store %arg4[%c0_35, %c2_36], %78 {strides = array<i32>} : memref<8x128xf32, #tpu.memory_space<vmem>>, vector<8x1xf32>,
    %c0_37 = arith.constant 0 : index
    %c5 = arith.constant 5 : index
    %80 = vector.load %arg4[%c0_37, %c5] : memref<8x128xf32, #tpu.memory_space<vmem>>, vector<8x1xf32>
    %cst_38 = arith.constant dense<0.000000e+00> : vector<8xf32>
    %81 = vector.multi_reduction <add>, %69, %cst_38 [1] : vector<8x128xf32> to vector<8xf32>
    %82 = vector.shape_cast %81 : vector<8xf32> to vector<8x1xf32>
    %83 = arith.addf %80, %82 : vector<8x1xf32>
    %c0_39 = arith.constant 0 : index
    %c5_40 = arith.constant 5 : index
    %84 = vector.load %arg4[%c0_39, %c5_40] : memref<8x128xf32, #tpu.memory_space<vmem>>, vector<8x1xf32>
    tpu.vector_store %arg4[%c0_39, %c5_40], %83 {strides = array<i32>} : memref<8x128xf32, #tpu.memory_space<vmem>>, vector<8x1xf32>,
    %c0_41 = arith.constant 0 : index
    %c8_42 = arith.constant 8 : index
    %85 = vector.load %arg4[%c0_41, %c8_42] : memref<8x128xf32, #tpu.memory_space<vmem>>, vector<8x1xf32>
    %cst_43 = arith.constant dense<0.000000e+00> : vector<8xf32>
    %86 = vector.multi_reduction <add>, %73, %cst_43 [1] : vector<8x128xf32> to vector<8xf32>
    %87 = vector.shape_cast %86 : vector<8xf32> to vector<8x1xf32>
    %88 = arith.addf %85, %87 : vector<8x1xf32>
    %c0_44 = arith.constant 0 : index
    %c8_45 = arith.constant 8 : index
    %89 = vector.load %arg4[%c0_44, %c8_45] : memref<8x128xf32, #tpu.memory_space<vmem>>, vector<8x1xf32>
    tpu.vector_store %arg4[%c0_44, %c8_45], %88 {strides = array<i32>} : memref<8x128xf32, #tpu.memory_space<vmem>>, vector<8x1xf32>,
    return
  }
  func.func @transform_0(%arg0: i32, %arg1: i32) -> (i32, i32) {
    %c1_i32 = arith.constant 1 : i32
    %0 = arith.muli %arg0, %c1_i32 : i32
    %1 = arith.addi %0, %arg1 : i32
    %c0_i32 = arith.constant 0 : i32
    %c0_i32_0 = arith.constant 0 : i32
    return %c0_i32, %1 : i32, i32
  }
  func.func @transform_1(%arg0: i32, %arg1: i32) -> (i32, i32) {
    %c1_i32 = arith.constant 1 : i32
    %0 = arith.muli %arg0, %c1_i32 : i32
    %1 = arith.addi %0, %arg1 : i32
    %c0_i32 = arith.constant 0 : i32
    %c0_i32_0 = arith.constant 0 : i32
    return %c0_i32, %1 : i32, i32
  }
  func.func @transform_2(%arg0: i32, %arg1: i32) -> (i32, i32) {
    %c0_i32 = arith.constant 0 : i32
    %c0_i32_0 = arith.constant 0 : i32
    return %arg0, %c0_i32 : i32, i32
  }
}

</mosaic_0001>

<llo_original>
// kernel: tpu_custom_call.1
$region0: #{tpu_custom_call.1}
  #allocation0 [shape = 'u32[]', space=smem, size = 0x4, offset = 0x4, fixed_abs, tag = 'smem constant byte address 0x4 - core index']
  #allocation1 [shape = 'u32[144,128]{1,0:T(1,128)}', space=vmem, size = 0x12000, scoped, tag = 'internal scratch']
  %s0 = inlined_call_operand.hbm [shape: f32[24,128], index: 0, kind: input, shape index: {}]
  %s1 = inlined_call_operand.hbm [shape: s32[8,128], index: 1, kind: input, shape index: {}]
  %s2 = inlined_call_operand.hbm [shape: f32[8,128], index: 2, kind: output, shape index: {}]
  %s3 = sld [smem:[#allocation0]]
  $region30: #{tpu_custom_call.1} parent=0
    _
  %s5 = ssub.s32 1, %s3
  %s6 = scalar_select 0, %s5, %s3
  $region1: #{tpu_custom_call.1} parent=0
    #allocation2 [shape = 'u8[12288]{0}', space=vmem, size = 0x3000, scoped, tag = 'input window, operand 0, single buffered']
    #allocation3 [shape = 's32[1]{0}', space=sflag, size = 0x4, scoped, tag = 'scoped memory for tpu_custom_call.1']
    #allocation4 [shape = 's32[1]{0}', space=sflag, size = 0x4, scoped, tag = 'scoped memory for tpu_custom_call.1']
    #allocation5 [shape = 'u8[4096]{0}', space=vmem, size = 0x1000, scoped, tag = 'input window, operand 1, single buffered']
    #allocation6 [shape = 's32[1]{0}', space=sflag, size = 0x4, scoped, tag = 'scoped memory for tpu_custom_call.1']
    #allocation7 [shape = 'u8[4096]{0}', space=vmem, size = 0x1000, scoped, tag = 'output window, operand 0, single buffered']
    %7 = vsyncpa [#allocation3], 0
    %8 = vsyncpa [#allocation6], 0
    %9 = vsyncpa [#allocation4], 0
    // Predicated region
    $region2: #{tpu_custom_call.1} parent=1 // pred_check
      _
    $region3: #{tpu_custom_call.1} parent=1 // pred_check_branch
      %11 = sbr.rel (0) target = $region5
    $region4: #{tpu_custom_call.1} parent=1 // pred_region
      %s12 = sadd.s32 0, 0
      %s14 = ssub.s32 384, 384
      %15 = vsyncadd [#allocation3], %s14
      %s16 = smul.addr %s12, 128
      %s17 = scalar_lea.hbm %s0, %s16
      %s18 = sshll.u32 [#allocation2], 4
      %s19 = int_to_ptr.vmem [resolvable:$true] %s18
      %24 = dma.hbm_to_vmem [thread:$0]  %s17, 384, %s19, [#allocation3], 128, 128, 8
    $region5: #{tpu_custom_call.1} parent=1 // pred_fallthru
      _
    // Predicated region
    $region6: #{tpu_custom_call.1} parent=1 // pred_check
      _
    $region7: #{tpu_custom_call.1} parent=1 // pred_check_branch
      %26 = sbr.rel (0) target = $region9
    $region8: #{tpu_custom_call.1} parent=1 // pred_region
      %s27 = sadd.s32 0, 0
      %s29 = ssub.s32 128, 128
      %30 = vsyncadd [#allocation6], %s29
      %s31 = smul.addr %s27, 128
      %s32 = scalar_lea.hbm %s1, %s31
      %s34 = sshll.u32 [#allocation5], 4
      %s35 = int_to_ptr.vmem [resolvable:$true] %s34
      %37 = dma.hbm_to_vmem [thread:$0]  %s32, 128, %s35, [#allocation6]
    $region9: #{tpu_custom_call.1} parent=1 // pred_fallthru
      _
    // Predicated region
    $region10: #{tpu_custom_call.1} parent=1 // pred_check
      _
    $region11: #{tpu_custom_call.1} parent=1 // pred_check_branch
      %39 = sbr.rel (0) target = $region13
    $region12: #{tpu_custom_call.1} parent=1 // pred_region
      %40 = dma.done [#allocation3], 384
    $region13: #{tpu_custom_call.1} parent=1 // pred_fallthru
      _
    // Predicated region
    $region14: #{tpu_custom_call.1} parent=1 // pred_check
      _
    $region15: #{tpu_custom_call.1} parent=1 // pred_check_branch
      %42 = sbr.rel (0) target = $region17
    $region16: #{tpu_custom_call.1} parent=1 // pred_region
      %43 = dma.done [#allocation6], 128
    $region17: #{tpu_custom_call.1} parent=1 // pred_fallthru
      _
    %s44 = sadd.s32 0, 0
    %s45 = sadd.s32 0, 0
    %p46 = scmp.eq.s32.totalorder 0, 0
    // Predicated region
    $region18: #{tpu_custom_call.1} parent=1 // pred_check
      %p47 = pneg %p46
    $region19: #{tpu_custom_call.1} parent=1 // pred_check_branch
      %49 = sbr.rel (%p47) target = $region21
    $region20: #{tpu_custom_call.1} parent=1 // pred_region
      %50 = vst [vmem:[#allocation7] sm:$0xff] 0.0
    $region21: #{tpu_custom_call.1} parent=1 // pred_fallthru
      _
    %v51 = vld [vmem:[#allocation2] sm:$0xff]
    %v52 = vld [vmem:[#allocation2 + $0x8] sm:$0xff]
    %v53 = vld [vmem:[#allocation2 + $0x10] sm:$0xff]
    %v54 = vmax.f32 %v51, %v52
    %v55 = vmax.f32 %v54, %v53
    %v56 = vsub.f32 %v51, %v55
    %v57 = vmul.f32 %v56, 1.442695
    %v58 = vpow.pop %v57
    %v59 = vsub.f32 %v52, %v55
    %v60 = vmul.f32 %v59, 1.442695
    %v61 = vpow.pop %v60
    %v62 = vsub.f32 %v53, %v55
    %v63 = vmul.f32 %v62, 1.442695
    %v64 = vpow.pop %v63
    %v65 = vadd.f32 %v58, %v61
    %v66 = vadd.f32 %v65, %v64
    %v67 = vrcp.pop %v66
    %v68 = vmul.f32 %v66, %v67
    %v69 = vsub.f32 2.0, %v68
    %v70 = vmul.f32 %v67, %v69
    %v71 = vld [vmem:[#allocation5] sm:$0xff]
    %vm72 = vcmp.ge.s32.totalorder %v71, 0
    %v73 = vsel %vm72, 1, 0
    %v74 = vcvt.s32.f32 %v73
    %v75 = vmul.f32 %v70, %v74
    %v76 = vmul.f32 %v58, %v75
    %vm77 = vcmp.eq.s32.totalorder %v71, 0
    %v78 = vsel %vm77, 1, 0
    %v79 = vcvt.s32.f32 %v78
    %v80 = vmul.f32 %v79, %v76
    %v81 = vld [vmem:[#allocation7] sm:$0xff]
    %82 = vadd.xlane.f32.xlu0 %v80
    %v83 = vpop.xlane.xlu0 %82
    %v84 = vadd.f32 %v81, %v83
    %vm85 = vcmask 7168
    %86 = vst.msk [vmem:[#allocation7] sm:$0xff] %vm85, %v84
    %v87 = vld [vmem:[#allocation7] sm:$0xff]
    %88 = vadd.xlane.f32.xlu0 %v76
    %v89 = vpop.xlane.xlu0 %88
    %v90 = vadd.f32 %v87, %v89
    %vm91 = vcmask 31768
    %92 = vst.msk [vmem:[#allocation7] sm:$0xff] %vm91, %v90
    %v93 = vld [vmem:[#allocation7] sm:$0xff]
    %94 = vadd.xlane.f32.xlu0 %v79
    %v95 = vpop.xlane.xlu0 %94
    %v96 = vadd.f32 %v93, %v95
    %vm97 = vcmask 56368
    %98 = vst.msk [vmem:[#allocation7] sm:$0xff] %vm97, %v96
    %v99 = vmul.f32 %v61, %v75
    %vm100 = vcmp.eq.s32.totalorder %v71, 1
    %v101 = vsel %vm100, 1, 0
    %v102 = vcvt.s32.f32 %v101
    %v103 = vmul.f32 %v102, %v99
    %v104 = vld [vmem:[#allocation7] sm:$0xff]
    %105 = vadd.xlane.f32.xlu0 %v103
    %v106 = vpop.xlane.xlu0 %105
    %v107 = vadd.f32 %v104, %v106
    %vm108 = vcmask 15368
    %109 = vst.msk [vmem:[#allocation7] sm:$0xff] %vm108, %v107
    %v110 = vld [vmem:[#allocation7] sm:$0xff]
    %111 = vadd.xlane.f32.xlu0 %v99
    %v112 = vpop.xlane.xlu0 %111
    %v113 = vadd.f32 %v110, %v112
    %vm114 = vcmask 39968
    %115 = vst.msk [vmem:[#allocation7] sm:$0xff] %vm114, %v113
    %v116 = vld [vmem:[#allocation7] sm:$0xff]
    %117 = vadd.xlane.f32.xlu0 %v102
    %v118 = vpop.xlane.xlu0 %117
    %v119 = vadd.f32 %v116, %v118
    %vm120 = vcmask 64568
    %121 = vst.msk [vmem:[#allocation7] sm:$0xff] %vm120, %v119
    %v122 = vmul.f32 %v64, %v75
    %vm123 = vcmp.eq.s32.totalorder %v71, 2
    %v124 = vsel %vm123, 1, 0
    %v125 = vcvt.s32.f32 %v124
    %v126 = vmul.f32 %v125, %v122
    %v127 = vld [vmem:[#allocation7] sm:$0xff]
    %128 = vadd.xlane.f32.xlu0 %v126
    %v129 = vpop.xlane.xlu0 %128
    %v130 = vadd.f32 %v127, %v129
    %vm131 = vcmask 23568
    %132 = vst.msk [vmem:[#allocation7] sm:$0xff] %vm131, %v130
    %v133 = vld [vmem:[#allocation7] sm:$0xff]
    %134 = vadd.xlane.f32.xlu0 %v122
    %v135 = vpop.xlane.xlu0 %134
    %v136 = vadd.f32 %v133, %v135
    %vm137 = vcmask 48168
    %138 = vst.msk [vmem:[#allocation7] sm:$0xff] %vm137, %v136
    %v139 = vld [vmem:[#allocation7] sm:$0xff]
    %140 = vadd.xlane.f32.xlu0 %v125
    %v141 = vpop.xlane.xlu0 %140
    %v142 = vadd.f32 %v139, %v141
    %vm143 = vcmask 72768
    %144 = vst.msk [vmem:[#allocation7] sm:$0xff] %vm143, %v142
    // Predicated region
    $region22: #{tpu_custom_call.1} parent=1 // pred_check
      _
    $region23: #{tpu_custom_call.1} parent=1 // pred_check_branch
      %146 = sbr.rel (0) target = $region25
    $region24: #{tpu_custom_call.1} parent=1 // pred_region
      %s148 = ssub.s32 128, 128
      %149 = vsyncadd [#allocation4], %s148
      %s151 = sshll.u32 [#allocation7], 4
      %s152 = int_to_ptr.vmem [resolvable:$true] %s151
      %154 = dma.vmem_to_hbm [thread:$0]  %s152, 128, %s2, [#allocation4]
    $region25: #{tpu_custom_call.1} parent=1 // pred_fallthru
      _
    // Predicated region
    $region26: #{tpu_custom_call.1} parent=1 // pred_check
      _
    $region27: #{tpu_custom_call.1} parent=1 // pred_check_branch
      %156 = sbr.rel (0) target = $region29
    $region28: #{tpu_custom_call.1} parent=1 // pred_region
      %157 = dma.done [#allocation4], 128
    $region29: #{tpu_custom_call.1} parent=1 // pred_fallthru
      _
    %158 = vsyncpa [#allocation3], 1
    %159 = vsyncpa [#allocation6], 1
    %160 = vsyncpa [#allocation4], 1

</llo_original>
